<compile_context>
chip_gen: v7x
topology: tpu7x:2x2x1
jax: 0.10.0
libtpu: 0.0.40
codegen_flags: <defaults>
</compile_context>

<pallas_src>
import functools
import math

import jax
import jax.numpy as jnp
from jax.experimental import pallas as pl
from jax.experimental.pallas import tpu as pltpu

_LANE = 128          # lane granule (last dim)
_SUBLANE = 8         # f32 sublane granule (second-to-last dim)
_MAX_BATCH_TILE = 256


def _round_up(x, m):
    return (x + m - 1) // m * m


# ----------------------------- Pallas kernel --------------------------------

def _kalei_policy_kernel(mask_ids_ref,                 # scalar prefetch (SMEM)
                         x_ref,
                         w1_ref, b1_ref, m1_ref,
                         w2_ref, b2_ref, m2_ref,
                         w3_ref, b3_ref, m3_ref,
                         scale_ref, mean_ref,
                         out_ref):
    del mask_ids_ref   # mask selection already handled by the mask index_maps
    x = x_ref[...]                                     # (block_b, Dp) f32

    # layer 1: masked linear + relu
    w1 = w1_ref[...] * m1_ref[...].astype(jnp.float32)          # (Dp, H1p)
    h = jnp.dot(x, w1, preferred_element_type=jnp.float32) + b1_ref[...]
    h = jnp.maximum(h, 0.0)

    # layer 2: masked linear + relu
    w2 = w2_ref[...] * m2_ref[...].astype(jnp.float32)          # (H1p, H2p)
    h = jnp.dot(h, w2, preferred_element_type=jnp.float32) + b2_ref[...]
    h = jnp.maximum(h, 0.0)

    # layer 3 (output): masked linear + tanh (final_activation_func)
    w3 = w3_ref[...] * m3_ref[...].astype(jnp.float32)          # (H2p, Ap)
    y = jnp.tanh(jnp.dot(h, w3, preferred_element_type=jnp.float32) + b3_ref[...])

    # rescale to action bounds: scale * x + mean
    out_ref[...] = scale_ref[...] * y + mean_ref[...]


# -------------------------- parameter preparation ----------------------------

def _pad_params(params):
    """Pad weights/biases/masks to (8,128)-aligned shapes; masks -> int8."""
    w1, b1, m1 = params["w1"], params["b1"], params["m1"]
    w2, b2, m2 = params["w2"], params["b2"], params["m2"]
    w3, b3, m3 = params["w3"], params["b3"], params["m3"]
    scale, mean = params["scale"], params["mean"]

    D, H1 = w1.shape
    H2 = w2.shape[1]
    A = w3.shape[1]
    Dp, H1p, H2p, Ap = (_round_up(d, _LANE) for d in (D, H1, H2, A))

    def pad2(x, r, c):
        x = x.astype(jnp.float32)
        return jnp.pad(x, ((0, r - x.shape[0]), (0, c - x.shape[1])))

    def pad_mask(m, r, c):
        m8 = (m != 0).astype(jnp.int8)
        return jnp.pad(m8, ((0, 0), (0, r - m.shape[1]), (0, c - m.shape[2])))

    padded = dict(
        w1=pad2(w1, Dp, H1p), b1=pad2(b1, 1, H1p), m1=pad_mask(m1, Dp, H1p),
        w2=pad2(w2, H1p, H2p), b2=pad2(b2, 1, H2p), m2=pad_mask(m2, H1p, H2p),
        w3=pad2(w3, H2p, Ap), b3=pad2(b3, 1, Ap), m3=pad_mask(m3, H2p, Ap),
        scale=pad2(scale, 1, Ap), mean=pad2(mean, 1, Ap),
    )
    return padded, A


# ------------------------------ fused forward --------------------------------

def _nbytes(x):
    return math.prod(x.shape) * jnp.dtype(x.dtype).itemsize


@functools.partial(jax.jit, static_argnames=("act_dim",))
def _kalei_forward(obs, mask_id, p, *, act_dim):
    B, D = obs.shape
    Dp, H1p = p["w1"].shape
    H2p = p["w2"].shape[1]
    Ap = p["w3"].shape[1]

    # batch tiling: one tile if small, 256-row tiles otherwise
    if B <= _MAX_BATCH_TILE:
        block_b = _round_up(B, _SUBLANE)
        Bp = block_b
    else:
        block_b = _MAX_BATCH_TILE
        Bp = _round_up(B, block_b)
    num_tiles = Bp // block_b

    obs_p = jnp.pad(obs.astype(jnp.float32), ((0, Bp - B), (0, Dp - D)))
    # one mask id per batch tile (all identical here; the pattern supports
    # heterogeneous per-tile masks for free)
    mask_ids = jnp.full((num_tiles,), jnp.asarray(mask_id, jnp.int32),
                        dtype=jnp.int32)

    def full_spec(shape):
        n = len(shape)
        return pl.BlockSpec(shape, lambda i, mids: (0,) * n)

    def mask_spec(din, dout):
        return pl.BlockSpec((pl.Squeezed(), din, dout),
                            lambda i, mids: (mids[i], 0, 0))

    in_specs = [
        pl.BlockSpec((block_b, Dp), lambda i, mids: (i, 0)),   # obs tile
        full_spec((Dp, H1p)),  full_spec((1, H1p)),  mask_spec(Dp, H1p),
        full_spec((H1p, H2p)), full_spec((1, H2p)),  mask_spec(H1p, H2p),
        full_spec((H2p, Ap)),  full_spec((1, Ap)),   mask_spec(H2p, Ap),
        full_spec((1, Ap)),    full_spec((1, Ap)),
    ]
    out_spec = pl.BlockSpec((block_b, Ap), lambda i, mids: (i, 0))

    # Explicit VMEM budget: weights/biases/masks + in/out tiles + f32
    # intermediates, generous 4x factor for double-buffering, floored at the
    # 32 MiB default and capped at v7x's 64 MiB physical VMEM.
    est = sum(_nbytes(p[k]) for k in
              ("w1", "b1", "m1", "w2", "b2", "m2", "w3", "b3", "scale", "mean"))
    est += (Dp * H1p + H1p * H2p + H2p * Ap) * 4          # W*M products (f32)
    est += block_b * (Dp + H1p + H2p + Ap) * 4            # activations / out
    vmem_limit = int(min(max(4 * est, 32 * 1024 * 1024), 64 * 1024 * 1024))

    out_p = pl.pallas_call(
        _kalei_policy_kernel,
        out_shape=jax.ShapeDtypeStruct((Bp, Ap), jnp.float32),
        grid_spec=pltpu.PrefetchScalarGridSpec(
            num_scalar_prefetch=1,
            grid=(num_tiles,),
            in_specs=in_specs,
            out_specs=out_spec,
        ),
        compiler_params=pltpu.CompilerParams(
            dimension_semantics=("parallel",),
            vmem_limit_bytes=vmem_limit),
    )(mask_ids, obs_p,
      p["w1"], p["b1"], p["m1"],
      p["w2"], p["b2"], p["m2"],
      p["w3"], p["b3"], p["m3"],
      p["scale"], p["mean"])

    # slice off padded batch rows and padded action lanes (padded lanes hold
    # scale*tanh(0)+mean of the zero-padded columns, so they must be dropped)
    return out_p[:B, :act_dim]


def make_kalei_policy(params):
    """Pad parameters once and return a jitted forward(obs, mask_id)."""
    padded, act_dim = _pad_params(params)

    def forward(obs, mask_id):
        return _kalei_forward(obs, mask_id, padded, act_dim=act_dim)

    return forward


# --------------------------- pure-JAX reference ------------------------------

def reference_forward(obs, mask_id, params):
    w1 = params["w1"] * params["m1"][mask_id]
    w2 = params["w2"] * params["m2"][mask_id]
    w3 = params["w3"] * params["m3"][mask_id]
    h = jnp.maximum(obs @ w1 + params["b1"], 0.0)
    h = jnp.maximum(h @ w2 + params["b2"], 0.0)
    y = jnp.tanh(h @ w3 + params["b3"])
    return params["scale"] * y + params["mean"]


# --------------------------------- main ---------------------------------------

if __name__ == "__main__":
    key = jax.random.PRNGKey(0)

    # Small shapes consistent with the module: vector obs -> MLP -> actions.
    B = 2              # batch of observations
    D_OBS = 24         # obs_space.shape[0]
    HIDDEN = (32, 32)  # args['hidden_sizes']
    ACT = 6            # action_space.shape[0]
    N_MASKS = 4        # number of Kaleidoscope masks (one per agent)

    ks = jax.random.split(key, 12)

    def glorot(k, shape):
        fan_in, fan_out = shape
        lim = (6.0 / (fan_in + fan_out)) ** 0.5
        return jax.random.uniform(k, shape, jnp.float32, -lim, lim)

    params = {
        "w1": glorot(ks[0], (D_OBS, HIDDEN[0])),
        "b1": jnp.zeros((1, HIDDEN[0]), jnp.float32),
        "m1": (jax.random.uniform(ks[1], (N_MASKS, D_OBS, HIDDEN[0])) > 0.3
               ).astype(jnp.float32),
        "w2": glorot(ks[2], (HIDDEN[0], HIDDEN[1])),
        "b2": jnp.zeros((1, HIDDEN[1]), jnp.float32),
        "m2": (jax.random.uniform(ks[3], (N_MASKS, HIDDEN[0], HIDDEN[1])) > 0.3
               ).astype(jnp.float32),
        "w3": glorot(ks[4], (HIDDEN[1], ACT)),
        "b3": jnp.zeros((1, ACT), jnp.float32),
        "m3": (jax.random.uniform(ks[5], (N_MASKS, HIDDEN[1], ACT)) > 0.3
               ).astype(jnp.float32),
    }

    # action bounds -> scale / mean (as in DeterministicPolicy.__init__)
    low = jnp.full((1, ACT), -2.0, jnp.float32)
    high = jnp.full((1, ACT), 1.0, jnp.float32)
    params["scale"] = (high - low) / 2.0
    params["mean"] = (high + low) / 2.0

    obs = jax.random.normal(ks[6], (B, D_OBS), jnp.float32)
    mask_id = jnp.int32(2)

    # TODO(synk): PlainCNN feature-extractor branch (3-D image obs) not
    # implemented — MaMuJoCo observations are flat vectors, so it is unused.
    policy = make_kalei_policy(params)
    out = policy(obs, mask_id)
    out = jax.block_until_ready(out)

    ref = reference_forward(obs, int(mask_id), params)
    assert out.shape == (B, ACT), out.shape
    assert jnp.allclose(out, ref, atol=1e-5, rtol=1e-5), (out, ref)

    print("KERNEL_OK")
</pallas_src>

<mosaic_0001>
module attributes {stable_mosaic.version = 11 : i64} {
  func.func @_kalei_policy_kernel(%arg0: i32, %arg1: memref<1xi32, #tpu.memory_space<smem>>, %arg2: memref<8x128xf32, #tpu.memory_space<vmem>>, %arg3: memref<128x128xf32, #tpu.memory_space<vmem>>, %arg4: memref<1x128xf32, #tpu.memory_space<vmem>>, %arg5: memref<1x128x128xi8, #tpu.memory_space<vmem>>, %arg6: memref<128x128xf32, #tpu.memory_space<vmem>>, %arg7: memref<1x128xf32, #tpu.memory_space<vmem>>, %arg8: memref<1x128x128xi8, #tpu.memory_space<vmem>>, %arg9: memref<128x128xf32, #tpu.memory_space<vmem>>, %arg10: memref<1x128xf32, #tpu.memory_space<vmem>>, %arg11: memref<1x128x128xi8, #tpu.memory_space<vmem>>, %arg12: memref<1x128xf32, #tpu.memory_space<vmem>>, %arg13: memref<1x128xf32, #tpu.memory_space<vmem>>, %arg14: memref<8x128xf32, #tpu.memory_space<vmem>>) attributes {dimension_semantics = [#tpu.dimension_semantics<parallel>], iteration_bounds = array<i64: 1>, scalar_prefetch = 1 : i64, scratch_operands = 0 : i64, tpu.core_type = #tpu.core_type<tc>, window_params = [{transform_indices = @transform_0, window_bounds = array<i64: 8, 128>}, {pipeline_mode = #tpu.pipeline_mode<synchronous>, transform_indices = @transform_1, window_bounds = array<i64: 128, 128>}, {pipeline_mode = #tpu.pipeline_mode<synchronous>, transform_indices = @transform_2, window_bounds = array<i64: 1, 128>}, {transform_indices = @transform_3, window_bounds = array<i64: 1, 128, 128>}, {pipeline_mode = #tpu.pipeline_mode<synchronous>, transform_indices = @transform_4, window_bounds = array<i64: 128, 128>}, {pipeline_mode = #tpu.pipeline_mode<synchronous>, transform_indices = @transform_5, window_bounds = array<i64: 1, 128>}, {transform_indices = @transform_6, window_bounds = array<i64: 1, 128, 128>}, {pipeline_mode = #tpu.pipeline_mode<synchronous>, transform_indices = @transform_7, window_bounds = array<i64: 128, 128>}, {pipeline_mode = #tpu.pipeline_mode<synchronous>, transform_indices = @transform_8, window_bounds = array<i64: 1, 128>}, {transform_indices = @transform_9, window_bounds = array<i64: 1, 128, 128>}, {pipeline_mode = #tpu.pipeline_mode<synchronous>, transform_indices = @transform_10, window_bounds = array<i64: 1, 128>}, {pipeline_mode = #tpu.pipeline_mode<synchronous>, transform_indices = @transform_11, window_bounds = array<i64: 1, 128>}, {transform_indices = @transform_12, window_bounds = array<i64: 8, 128>}]} {
    %c0 = arith.constant 0 : index
    %c0_0 = arith.constant 0 : index
    %0 = vector.load %arg2[%c0, %c0_0] : memref<8x128xf32, #tpu.memory_space<vmem>>, vector<8x128xf32>
    %c0_1 = arith.constant 0 : index
    %c0_2 = arith.constant 0 : index
    %1 = vector.load %arg3[%c0_1, %c0_2] : memref<128x128xf32, #tpu.memory_space<vmem>>, vector<128x128xf32>
    %c0_3 = arith.constant 0 : index
    %c0_4 = arith.constant 0 : index
    %c0_5 = arith.constant 0 : index
    %2 = vector.load %arg5[%c0_3, %c0_4, %c0_5] : memref<1x128x128xi8, #tpu.memory_space<vmem>>, vector<1x128x128xi8>
    %3 = vector.shape_cast %2 : vector<1x128x128xi8> to vector<128x128xi8>
    %4 = arith.sitofp %3 : vector<128x128xi8> to vector<128x128xf32>
    %5 = arith.mulf %1, %4 : vector<128x128xf32>
    %cst = arith.constant dense<0.000000e+00> : vector<8x128xf32>
    %6 = tpu.matmul %0, %5, %cst {dimension_numbers = #tpu.dot_dimension_numbers<[1], [0], [0], [1], [0, 0, 1, 1], [], []>} : vector<8x128xf32>, vector<128x128xf32>, vector<8x128xf32> -> vector<8x128xf32>
    %c0_6 = arith.constant 0 : index
    %c0_7 = arith.constant 0 : index
    %7 = vector.load %arg4[%c0_6, %c0_7] : memref<1x128xf32, #tpu.memory_space<vmem>>, vector<1x128xf32>
    %8 = vector.broadcast %7 : vector<1x128xf32> to vector<8x128xf32>
    %9 = arith.addf %6, %8 : vector<8x128xf32>
    %cst_8 = arith.constant 0.000000e+00 : f32
    %10 = vector.broadcast %cst_8 : f32 to vector<8x128xf32>
    %11 = arith.maximumf %9, %10 : vector<8x128xf32>
    %c0_9 = arith.constant 0 : index
    %c0_10 = arith.constant 0 : index
    %12 = vector.load %arg6[%c0_9, %c0_10] : memref<128x128xf32, #tpu.memory_space<vmem>>, vector<128x128xf32>
    %c0_11 = arith.constant 0 : index
    %c0_12 = arith.constant 0 : index
    %c0_13 = arith.constant 0 : index
    %13 = vector.load %arg8[%c0_11, %c0_12, %c0_13] : memref<1x128x128xi8, #tpu.memory_space<vmem>>, vector<1x128x128xi8>
    %14 = vector.shape_cast %13 : vector<1x128x128xi8> to vector<128x128xi8>
    %15 = arith.sitofp %14 : vector<128x128xi8> to vector<128x128xf32>
    %16 = arith.mulf %12, %15 : vector<128x128xf32>
    %cst_14 = arith.constant dense<0.000000e+00> : vector<8x128xf32>
    %17 = tpu.matmul %11, %16, %cst_14 {dimension_numbers = #tpu.dot_dimension_numbers<[1], [0], [0], [1], [0, 0, 1, 1], [], []>} : vector<8x128xf32>, vector<128x128xf32>, vector<8x128xf32> -> vector<8x128xf32>
    %c0_15 = arith.constant 0 : index
    %c0_16 = arith.constant 0 : index
    %18 = vector.load %arg7[%c0_15, %c0_16] : memref<1x128xf32, #tpu.memory_space<vmem>>, vector<1x128xf32>
    %19 = vector.broadcast %18 : vector<1x128xf32> to vector<8x128xf32>
    %20 = arith.addf %17, %19 : vector<8x128xf32>
    %cst_17 = arith.constant 0.000000e+00 : f32
    %21 = vector.broadcast %cst_17 : f32 to vector<8x128xf32>
    %22 = arith.maximumf %20, %21 : vector<8x128xf32>
    %c0_18 = arith.constant 0 : index
    %c0_19 = arith.constant 0 : index
    %23 = vector.load %arg9[%c0_18, %c0_19] : memref<128x128xf32, #tpu.memory_space<vmem>>, vector<128x128xf32>
    %c0_20 = arith.constant 0 : index
    %c0_21 = arith.constant 0 : index
    %c0_22 = arith.constant 0 : index
    %24 = vector.load %arg11[%c0_20, %c0_21, %c0_22] : memref<1x128x128xi8, #tpu.memory_space<vmem>>, vector<1x128x128xi8>
    %25 = vector.shape_cast %24 : vector<1x128x128xi8> to vector<128x128xi8>
    %26 = arith.sitofp %25 : vector<128x128xi8> to vector<128x128xf32>
    %27 = arith.mulf %23, %26 : vector<128x128xf32>
    %cst_23 = arith.constant dense<0.000000e+00> : vector<8x128xf32>
    %28 = tpu.matmul %22, %27, %cst_23 {dimension_numbers = #tpu.dot_dimension_numbers<[1], [0], [0], [1], [0, 0, 1, 1], [], []>} : vector<8x128xf32>, vector<128x128xf32>, vector<8x128xf32> -> vector<8x128xf32>
    %c0_24 = arith.constant 0 : index
    %c0_25 = arith.constant 0 : index
    %29 = vector.load %arg10[%c0_24, %c0_25] : memref<1x128xf32, #tpu.memory_space<vmem>>, vector<1x128xf32>
    %30 = vector.broadcast %29 : vector<1x128xf32> to vector<8x128xf32>
    %31 = arith.addf %28, %30 : vector<8x128xf32>
    %32 = math.tanh %31 : vector<8x128xf32>
    %c0_26 = arith.constant 0 : index
    %c0_27 = arith.constant 0 : index
    %33 = vector.load %arg12[%c0_26, %c0_27] : memref<1x128xf32, #tpu.memory_space<vmem>>, vector<1x128xf32>
    %34 = vector.broadcast %33 : vector<1x128xf32> to vector<8x128xf32>
    %35 = arith.mulf %34, %32 : vector<8x128xf32>
    %c0_28 = arith.constant 0 : index
    %c0_29 = arith.constant 0 : index
    %36 = vector.load %arg13[%c0_28, %c0_29] : memref<1x128xf32, #tpu.memory_space<vmem>>, vector<1x128xf32>
    %37 = vector.broadcast %36 : vector<1x128xf32> to vector<8x128xf32>
    %38 = arith.addf %35, %37 : vector<8x128xf32>
    %c0_30 = arith.constant 0 : index
    %c0_31 = arith.constant 0 : index
    %39 = vector.load %arg14[%c0_30, %c0_31] : memref<8x128xf32, #tpu.memory_space<vmem>>, vector<8x128xf32>
    tpu.vector_store %arg14[%c0_30, %c0_31], %38 {strides = array<i32>} : memref<8x128xf32, #tpu.memory_space<vmem>>, vector<8x128xf32>,
    return
  }
  func.func @transform_0(%arg0: i32, %arg1: memref<1xi32, #tpu.memory_space<smem>>) -> (i32, i32) {
    %c0_i32 = arith.constant 0 : i32
    %c0_i32_0 = arith.constant 0 : i32
    return %arg0, %c0_i32 : i32, i32
  }
  func.func @transform_1(%arg0: i32, %arg1: memref<1xi32, #tpu.memory_space<smem>>) -> (i32, i32) {
    %c0_i32 = arith.constant 0 : i32
    %c0_i32_0 = arith.constant 0 : i32
    %c0_i32_1 = arith.constant 0 : i32
    return %c0_i32, %c0_i32_0 : i32, i32
  }
  func.func @transform_2(%arg0: i32, %arg1: memref<1xi32, #tpu.memory_space<smem>>) -> (i32, i32) {
    %c0_i32 = arith.constant 0 : i32
    %c0_i32_0 = arith.constant 0 : i32
    %c0_i32_1 = arith.constant 0 : i32
    return %c0_i32, %c0_i32_0 : i32, i32
  }
  func.func @transform_3(%arg0: i32, %arg1: memref<1xi32, #tpu.memory_space<smem>>) -> (i32, i32, i32) {
    %0 = arith.index_cast %arg0 : i32 to index
    %1 = memref.load %arg1[%0] : memref<1xi32, #tpu.memory_space<smem>>
    %c0_i32 = arith.constant 0 : i32
    %c0_i32_0 = arith.constant 0 : i32
    %c0_i32_1 = arith.constant 0 : i32
    return %1, %c0_i32, %c0_i32_0 : i32, i32, i32
  }
  func.func @transform_4(%arg0: i32, %arg1: memref<1xi32, #tpu.memory_space<smem>>) -> (i32, i32) {
    %c0_i32 = arith.constant 0 : i32
    %c0_i32_0 = arith.constant 0 : i32
    %c0_i32_1 = arith.constant 0 : i32
    return %c0_i32, %c0_i32_0 : i32, i32
  }
  func.func @transform_5(%arg0: i32, %arg1: memref<1xi32, #tpu.memory_space<smem>>) -> (i32, i32) {
    %c0_i32 = arith.constant 0 : i32
    %c0_i32_0 = arith.constant 0 : i32
    %c0_i32_1 = arith.constant 0 : i32
    return %c0_i32, %c0_i32_0 : i32, i32
  }
  func.func @transform_6(%arg0: i32, %arg1: memref<1xi32, #tpu.memory_space<smem>>) -> (i32, i32, i32) {
    %0 = arith.index_cast %arg0 : i32 to index
    %1 = memref.load %arg1[%0] : memref<1xi32, #tpu.memory_space<smem>>
    %c0_i32 = arith.constant 0 : i32
    %c0_i32_0 = arith.constant 0 : i32
    %c0_i32_1 = arith.constant 0 : i32
    return %1, %c0_i32, %c0_i32_0 : i32, i32, i32
  }
  func.func @transform_7(%arg0: i32, %arg1: memref<1xi32, #tpu.memory_space<smem>>) -> (i32, i32) {
    %c0_i32 = arith.constant 0 : i32
    %c0_i32_0 = arith.constant 0 : i32
    %c0_i32_1 = arith.constant 0 : i32
    return %c0_i32, %c0_i32_0 : i32, i32
  }
  func.func @transform_8(%arg0: i32, %arg1: memref<1xi32, #tpu.memory_space<smem>>) -> (i32, i32) {
    %c0_i32 = arith.constant 0 : i32
    %c0_i32_0 = arith.constant 0 : i32
    %c0_i32_1 = arith.constant 0 : i32
    return %c0_i32, %c0_i32_0 : i32, i32
  }
  func.func @transform_9(%arg0: i32, %arg1: memref<1xi32, #tpu.memory_space<smem>>) -> (i32, i32, i32) {
    %0 = arith.index_cast %arg0 : i32 to index
    %1 = memref.load %arg1[%0] : memref<1xi32, #tpu.memory_space<smem>>
    %c0_i32 = arith.constant 0 : i32
    %c0_i32_0 = arith.constant 0 : i32
    %c0_i32_1 = arith.constant 0 : i32
    return %1, %c0_i32, %c0_i32_0 : i32, i32, i32
  }
  func.func @transform_10(%arg0: i32, %arg1: memref<1xi32, #tpu.memory_space<smem>>) -> (i32, i32) {
    %c0_i32 = arith.constant 0 : i32
    %c0_i32_0 = arith.constant 0 : i32
    %c0_i32_1 = arith.constant 0 : i32
    return %c0_i32, %c0_i32_0 : i32, i32
  }
  func.func @transform_11(%arg0: i32, %arg1: memref<1xi32, #tpu.memory_space<smem>>) -> (i32, i32) {
    %c0_i32 = arith.constant 0 : i32
    %c0_i32_0 = arith.constant 0 : i32
    %c0_i32_1 = arith.constant 0 : i32
    return %c0_i32, %c0_i32_0 : i32, i32
  }
  func.func @transform_12(%arg0: i32, %arg1: memref<1xi32, #tpu.memory_space<smem>>) -> (i32, i32) {
    %c0_i32 = arith.constant 0 : i32
    %c0_i32_0 = arith.constant 0 : i32
    return %arg0, %c0_i32 : i32, i32
  }
}

</mosaic_0001>

<llo_original>
// kernel: _kalei_forward.1
$region0: #{_kalei_forward.1}
  #allocation0 [shape = 'u32[]', space=smem, size = 0x4, offset = 0x4, fixed_abs, tag = 'smem constant byte address 0x4 - core index']
  #allocation1 [shape = 'u32[144,128]{1,0:T(1,128)}', space=vmem, size = 0x12000, scoped, tag = 'internal scratch']
  #allocation2 [shape = 's32[1]{0}', space=sflag, size = 0x4, scoped, tag = 'scoped memory for _kalei_forward.1']
  #allocation3 [shape = 's32[1]{0:T(128)S(6)}', space=smem, size = 0x200, scoped, tag = 'prefetched SMEM operand 0']
  %s0 = inlined_call_operand.<no memory space> [shape: s32[1], index: 0, kind: input, shape index: {}]
  %s1 = inlined_call_operand.vmem [shape: f32[8,128], index: 1, kind: input, shape index: {}]
  %s2 = inlined_call_operand.hbm [shape: f32[128,128], index: 2, kind: input, shape index: {}]
  %s3 = inlined_call_operand.vmem [shape: f32[1,128], index: 3, kind: input, shape index: {}]
  %s4 = inlined_call_operand.hbm [shape: s8[4,128,128], index: 4, kind: input, shape index: {}]
  %s5 = inlined_call_operand.hbm [shape: f32[128,128], index: 5, kind: input, shape index: {}]
  %s6 = inlined_call_operand.vmem [shape: f32[1,128], index: 6, kind: input, shape index: {}]
  %s7 = inlined_call_operand.hbm [shape: s8[4,128,128], index: 7, kind: input, shape index: {}]
  %s8 = inlined_call_operand.hbm [shape: f32[128,128], index: 8, kind: input, shape index: {}]
  %s9 = inlined_call_operand.vmem [shape: f32[1,128], index: 9, kind: input, shape index: {}]
  %s10 = inlined_call_operand.hbm [shape: s8[4,128,128], index: 10, kind: input, shape index: {}]
  %s11 = inlined_call_operand.vmem [shape: f32[1,128], index: 11, kind: input, shape index: {}]
  %s12 = inlined_call_operand.vmem [shape: f32[1,128], index: 12, kind: input, shape index: {}]
  %s13 = inlined_call_operand.vmem [shape: f32[8,128], index: 13, kind: output, shape index: {}]
  %s14 = sld [smem:[#allocation0]]
  $region82: #{_kalei_forward.1} parent=0
    _
  %s16 = ssub.s32 1, %s14
  %s17 = scalar_select 0, %s16, %s14
  %18 = sst [smem:[#allocation3]] %s0
  $region1: #{_kalei_forward.1} parent=0
    #allocation4 [shape = 'u8[65536]{0}', space=vmem, size = 0x10000, scoped, tag = 'input window, operand 2, single buffered']
    #allocation5 [shape = 's32[1]{0}', space=sflag, size = 0x4, scoped, tag = 'scoped memory for _kalei_forward.1']
    #allocation6 [shape = 'u8[16384]{0}', space=vmem, size = 0x4000, scoped, tag = 'input window, operand 4, single buffered']
    #allocation7 [shape = 's32[1]{0}', space=sflag, size = 0x4, scoped, tag = 'scoped memory for _kalei_forward.1']
    #allocation8 [shape = 'u8[65536]{0}', space=vmem, size = 0x10000, scoped, tag = 'input window, operand 5, single buffered']
    #allocation9 [shape = 'u8[16384]{0}', space=vmem, size = 0x4000, scoped, tag = 'input window, operand 7, single buffered']
    #allocation10 [shape = 's32[1]{0}', space=sflag, size = 0x4, scoped, tag = 'scoped memory for _kalei_forward.1']
    #allocation11 [shape = 'u8[65536]{0}', space=vmem, size = 0x10000, scoped, tag = 'input window, operand 8, single buffered']
    #allocation12 [shape = 'u8[16384]{0}', space=vmem, size = 0x4000, scoped, tag = 'input window, operand 10, single buffered']
    #allocation13 [shape = 's32[1]{0}', space=sflag, size = 0x4, scoped, tag = 'scoped memory for _kalei_forward.1']
    %19 = vsyncpa [#allocation5], 0
    %20 = vsyncpa [#allocation7], 0
    %21 = vsyncpa [#allocation10], 0
    %22 = vsyncpa [#allocation13], 0
    // Predicated region
    $region2: #{_kalei_forward.1} parent=1 // pred_check
      _
    $region3: #{_kalei_forward.1} parent=1 // pred_check_branch
      %24 = sbr.rel (0) target = $region5
    $region4: #{_kalei_forward.1} parent=1 // pred_region
      _
    $region5: #{_kalei_forward.1} parent=1 // pred_fallthru
      _
    // Predicated region
    $region6: #{_kalei_forward.1} parent=1 // pred_check
      _
    $region7: #{_kalei_forward.1} parent=1 // pred_check_branch
      %26 = sbr.rel (0) target = $region9
    $region8: #{_kalei_forward.1} parent=1 // pred_region
      %s28 = ssub.s32 2048, 2048
      %29 = vsyncadd [#allocation5], %s28
      %s30 = sshll.u32 [#allocation4], 4
      %s31 = int_to_ptr.vmem [resolvable:$true] %s30
      %36 = dma.hbm_to_vmem [thread:$0]  %s2, 2048, %s31, [#allocation5], 128, 128, 8
    $region9: #{_kalei_forward.1} parent=1 // pred_fallthru
      _
    // Predicated region
    $region10: #{_kalei_forward.1} parent=1 // pred_check
      _
    $region11: #{_kalei_forward.1} parent=1 // pred_check_branch
      %38 = sbr.rel (0) target = $region13
    $region12: #{_kalei_forward.1} parent=1 // pred_region
      _
    $region13: #{_kalei_forward.1} parent=1 // pred_fallthru
      _
    // Predicated region
    $region14: #{_kalei_forward.1} parent=1 // pred_check
      _
    $region15: #{_kalei_forward.1} parent=1 // pred_check_branch
      %40 = sbr.rel (0) target = $region17
    $region16: #{_kalei_forward.1} parent=1 // pred_region
      %s41 = sld [smem:[#allocation3]]
      %s43 = ssub.s32 512, 512
      %44 = vsyncadd [#allocation7], %s43
      %s45 = smul.addr %s41, 4
      %s46 = smul.addr %s45, 128
      %s47 = scalar_lea.hbm %s4, %s46
      %s48 = sshll.u32 [#allocation6], 4
      %s49 = int_to_ptr.vmem [resolvable:$true] %s48
      %54 = dma.hbm_to_vmem [thread:$0]  %s47, 512, %s49, [#allocation7], 128, 128, 8
    $region17: #{_kalei_forward.1} parent=1 // pred_fallthru
      _
    // Predicated region
    $region18: #{_kalei_forward.1} parent=1 // pred_check
      _
    $region19: #{_kalei_forward.1} parent=1 // pred_check_branch
      %56 = sbr.rel (0) target = $region21
    $region20: #{_kalei_forward.1} parent=1 // pred_region
      %s58 = ssub.s32 2048, 2048
      %59 = vsyncadd [#allocation7], %s58
      %s60 = sshll.u32 [#allocation8], 4
      %s61 = int_to_ptr.vmem [resolvable:$true] %s60
      %66 = dma.hbm_to_vmem [thread:$0]  %s5, 2048, %s61, [#allocation7], 128, 128, 8
    $region21: #{_kalei_forward.1} parent=1 // pred_fallthru
      _
    // Predicated region
    $region22: #{_kalei_forward.1} parent=1 // pred_check
      _
    $region23: #{_kalei_forward.1} parent=1 // pred_check_branch
      %68 = sbr.rel (0) target = $region25
    $region24: #{_kalei_forward.1} parent=1 // pred_region
      _
    $region25: #{_kalei_forward.1} parent=1 // pred_fallthru
      _
    // Predicated region
    $region26: #{_kalei_forward.1} parent=1 // pred_check
      _
    $region27: #{_kalei_forward.1} parent=1 // pred_check_branch
      %70 = sbr.rel (0) target = $region29
    $region28: #{_kalei_forward.1} parent=1 // pred_region
      %s71 = sld [smem:[#allocation3]]
      %s73 = ssub.s32 512, 512
      %74 = vsyncadd [#allocation10], %s73
      %s75 = smul.addr %s71, 4
      %s76 = smul.addr %s75, 128
      %s77 = scalar_lea.hbm %s7, %s76
      %s78 = sshll.u32 [#allocation9], 4
      %s79 = int_to_ptr.vmem [resolvable:$true] %s78
      %84 = dma.hbm_to_vmem [thread:$0]  %s77, 512, %s79, [#allocation10], 128, 128, 8
    $region29: #{_kalei_forward.1} parent=1 // pred_fallthru
      _
    // Predicated region
    $region30: #{_kalei_forward.1} parent=1 // pred_check
      _
    $region31: #{_kalei_forward.1} parent=1 // pred_check_branch
      %86 = sbr.rel (0) target = $region33
    $region32: #{_kalei_forward.1} parent=1 // pred_region
      %s88 = ssub.s32 2048, 2048
      %89 = vsyncadd [#allocation10], %s88
      %s90 = sshll.u32 [#allocation11], 4
      %s91 = int_to_ptr.vmem [resolvable:$true] %s90
      %96 = dma.hbm_to_vmem [thread:$0]  %s8, 2048, %s91, [#allocation10], 128, 128, 8
    $region33: #{_kalei_forward.1} parent=1 // pred_fallthru
      _
    // Predicated region
    $region34: #{_kalei_forward.1} parent=1 // pred_check
      _
    $region35: #{_kalei_forward.1} parent=1 // pred_check_branch
      %98 = sbr.rel (0) target = $region37
    $region36: #{_kalei_forward.1} parent=1 // pred_region
      _
    $region37: #{_kalei_forward.1} parent=1 // pred_fallthru
      _
    // Predicated region
    $region38: #{_kalei_forward.1} parent=1 // pred_check
      _
    $region39: #{_kalei_forward.1} parent=1 // pred_check_branch
      %100 = sbr.rel (0) target = $region41
    $region40: #{_kalei_forward.1} parent=1 // pred_region
      %s101 = sld [smem:[#allocation3]]
      %s103 = ssub.s32 512, 512
      %104 = vsyncadd [#allocation13], %s103
      %s105 = smul.addr %s101, 4
      %s106 = smul.addr %s105, 128
      %s107 = scalar_lea.hbm %s10, %s106
      %s108 = sshll.u32 [#allocation12], 4
      %s109 = int_to_ptr.vmem [resolvable:$true] %s108
      %114 = dma.hbm_to_vmem [thread:$0]  %s107, 512, %s109, [#allocation13], 128, 128, 8
    $region41: #{_kalei_forward.1} parent=1 // pred_fallthru
      _
    // Predicated region
    $region42: #{_kalei_forward.1} parent=1 // pred_check
      _
    $region43: #{_kalei_forward.1} parent=1 // pred_check_branch
      %116 = sbr.rel (0) target = $region45
    $region44: #{_kalei_forward.1} parent=1 // pred_region
      _
    $region45: #{_kalei_forward.1} parent=1 // pred_fallthru
      _
    // Predicated region
    $region46: #{_kalei_forward.1} parent=1 // pred_check
      _
    $region47: #{_kalei_forward.1} parent=1 // pred_check_branch
      %118 = sbr.rel (0) target = $region49
    $region48: #{_kalei_forward.1} parent=1 // pred_region
      _
    $region49: #{_kalei_forward.1} parent=1 // pred_fallthru
      _
    // Predicated region
    $region50: #{_kalei_forward.1} parent=1 // pred_check
      _
    $region51: #{_kalei_forward.1} parent=1 // pred_check_branch
      %120 = sbr.rel (0) target = $region53
    $region52: #{_kalei_forward.1} parent=1 // pred_region
      %121 = dma.done [#allocation5], 2048
    $region53: #{_kalei_forward.1} parent=1 // pred_fallthru
      _
    // Predicated region
    $region54: #{_kalei_forward.1} parent=1 // pred_check
      _
    $region55: #{_kalei_forward.1} parent=1 // pred_check_branch
      %123 = sbr.rel (0) target = $region57
    $region56: #{_kalei_forward.1} parent=1 // pred_region
      %124 = dma.done [#allocation7], 512
    $region57: #{_kalei_forward.1} parent=1 // pred_fallthru
      _
    // Predicated region
    $region58: #{_kalei_forward.1} parent=1 // pred_check
      _
    $region59: #{_kalei_forward.1} parent=1 // pred_check_branch
      %126 = sbr.rel (0) target = $region61
    $region60: #{_kalei_forward.1} parent=1 // pred_region
      %127 = dma.done [#allocation7], 2048
    $region61: #{_kalei_forward.1} parent=1 // pred_fallthru
      _
    // Predicated region
    $region62: #{_kalei_forward.1} parent=1 // pred_check
      _
    $region63: #{_kalei_forward.1} parent=1 // pred_check_branch
      %129 = sbr.rel (0) target = $region65
    $region64: #{_kalei_forward.1} parent=1 // pred_region
      %130 = dma.done [#allocation10], 512
    $region65: #{_kalei_forward.1} parent=1 // pred_fallthru
      _
    // Predicated region
    $region66: #{_kalei_forward.1} parent=1 // pred_check
      _
    $region67: #{_kalei_forward.1} parent=1 // pred_check_branch
      %132 = sbr.rel (0) target = $region69
    $region68: #{_kalei_forward.1} parent=1 // pred_region
      %133 = dma.done [#allocation10], 2048
    $region69: #{_kalei_forward.1} parent=1 // pred_fallthru
      _
    // Predicated region
    $region70: #{_kalei_forward.1} parent=1 // pred_check
      _
    $region71: #{_kalei_forward.1} parent=1 // pred_check_branch
      %135 = sbr.rel (0) target = $region73
    $region72: #{_kalei_forward.1} parent=1 // pred_region
      %136 = dma.done [#allocation13], 512
    $region73: #{_kalei_forward.1} parent=1 // pred_fallthru
      _
    %s137 = sld [smem:[#allocation3]]
    %s138 = sld [smem:[#allocation3]]
    %s139 = sld [smem:[#allocation3]]
    %v140 = vld [vmem:[%s1] sm:$0xff]
    %v141 = vld [vmem:[#allocation4] sm:$0xff]
    %v142 = vld [vmem:[#allocation4 + $0x8] sm:$0xff]
    %v143 = vld [vmem:[#allocation4 + $0x10] sm:$0xff]
    %v144 = vld [vmem:[#allocation4 + $0x18] sm:$0xff]
    %v145 = vld [vmem:[#allocation4 + $0x20] sm:$0xff]
    %v146 = vld [vmem:[#allocation4 + $0x28] sm:$0xff]
    %v147 = vld [vmem:[#allocation4 + $0x30] sm:$0xff]
    %v148 = vld [vmem:[#allocation4 + $0x38] sm:$0xff]
    %v149 = vld [vmem:[#allocation4 + $0x40] sm:$0xff]
    %v150 = vld [vmem:[#allocation4 + $0x48] sm:$0xff]
    %v151 = vld [vmem:[#allocation4 + $0x50] sm:$0xff]
    %v152 = vld [vmem:[#allocation4 + $0x58] sm:$0xff]
    %v153 = vld [vmem:[#allocation4 + $0x60] sm:$0xff]
    %v154 = vld [vmem:[#allocation4 + $0x68] sm:$0xff]
    %v155 = vld [vmem:[#allocation4 + $0x70] sm:$0xff]
    %v156 = vld [vmem:[#allocation4 + $0x78] sm:$0xff]
    %v157 = vld [vmem:[#allocation6] sm:$0xff]
    %v158 = vld [vmem:[#allocation6 + $0x8] sm:$0xff]
    %v159 = vld [vmem:[#allocation6 + $0x10] sm:$0xff]
    %v160 = vld [vmem:[#allocation6 + $0x18] sm:$0xff]
    %v161 = vunpack.c.0.s8 %v157
    %v162 = vunpack.c.1.s8 %v157
    %v163 = vunpack.c.2.s8 %v157
    %v164 = vunpack.c.3.s8 %v157
    %v165 = vunpack.c.0.s8 %v158
    %v166 = vunpack.c.1.s8 %v158
    %v167 = vunpack.c.2.s8 %v158
    %v168 = vunpack.c.3.s8 %v158
    %v169 = vunpack.c.0.s8 %v159
    %v170 = vunpack.c.1.s8 %v159
    %v171 = vunpack.c.2.s8 %v159
    %v172 = vunpack.c.3.s8 %v159
    %v173 = vunpack.c.0.s8 %v160
    %v174 = vunpack.c.1.s8 %v160
    %v175 = vunpack.c.2.s8 %v160
    %v176 = vunpack.c.3.s8 %v160
    %v177 = vcvt.s32.f32 %v161
    %v178 = vcvt.s32.f32 %v162
    %v179 = vcvt.s32.f32 %v163
    %v180 = vcvt.s32.f32 %v164
    %v181 = vcvt.s32.f32 %v165
    %v182 = vcvt.s32.f32 %v166
    %v183 = vcvt.s32.f32 %v167
    %v184 = vcvt.s32.f32 %v168
    %v185 = vcvt.s32.f32 %v169
    %v186 = vcvt.s32.f32 %v170
    %v187 = vcvt.s32.f32 %v171
    %v188 = vcvt.s32.f32 %v172
    %v189 = vcvt.s32.f32 %v173
    %v190 = vcvt.s32.f32 %v174
    %v191 = vcvt.s32.f32 %v175
    %v192 = vcvt.s32.f32 %v176
    %v193 = vmul.f32 %v141, %v177
    %v194 = vmul.f32 %v142, %v178
    %v195 = vmul.f32 %v143, %v179
    %v196 = vmul.f32 %v144, %v180
    %v197 = vmul.f32 %v145, %v181
    %v198 = vmul.f32 %v146, %v182
    %v199 = vmul.f32 %v147, %v183
    %v200 = vmul.f32 %v148, %v184
    %v201 = vmul.f32 %v149, %v185
    %v202 = vmul.f32 %v150, %v186
    %v203 = vmul.f32 %v151, %v187
    %v204 = vmul.f32 %v152, %v188
    %v205 = vmul.f32 %v153, %v189
    %v206 = vmul.f32 %v154, %v190
    %v207 = vmul.f32 %v155, %v191
    %v208 = vmul.f32 %v156, %v192
    %v209 = vld [vmem:[%s3] sm:$0x1]
    %v211 = vlaneseq
    %v212 = vshrl.u32 %v211, 7
    %v213 = vsub.s32 0, %v212
    %v214 = vrot.slane %v209, %v213
    %216 = vmatprep.subr.mxu0 0.0
    %217 = vmatpush1.msra.mxu0 %v193
    %218 = vmatprep.subr.mxu0 0.0
    %219 = vmatpush1.msra.mxu0 %v194
    %220 = vmatprep.subr.mxu0 0.0
    %221 = vmatpush1.msra.mxu0 %v195
    %222 = vmatprep.subr.mxu0 0.0
    %223 = vmatpush1.msra.mxu0 %v196
    %224 = vmatprep.subr.mxu0 0.0
    %225 = vmatpush1.msra.mxu0 %v197
    %226 = vmatprep.subr.mxu0 0.0
    %227 = vmatpush1.msra.mxu0 %v198
    %228 = vmatprep.subr.mxu0 0.0
    %229 = vmatpush1.msra.mxu0 %v199
    %230 = vmatprep.subr.mxu0 0.0
    %231 = vmatpush1.msra.mxu0 %v200
    %232 = vmatprep.subr.mxu0 0.0
    %233 = vmatpush1.msra.mxu0 %v201
    %234 = vmatprep.subr.mxu0 0.0
    %235 = vmatpush1.msra.mxu0 %v202
    %236 = vmatprep.subr.mxu0 0.0
    %237 = vmatpush1.msra.mxu0 %v203
    %238 = vmatprep.subr.mxu0 0.0
    %239 = vmatpush1.msra.mxu0 %v204
    %240 = vmatprep.subr.mxu0 0.0
    %241 = vmatpush1.msra.mxu0 %v205
    %242 = vmatprep.subr.mxu0 0.0
    %243 = vmatpush1.msra.mxu0 %v206
    %244 = vmatprep.subr.mxu0 0.0
    %245 = vmatpush1.msra.mxu0 %v207
    %246 = vmatprep.subr.mxu0 0.0
    %247 = vmatpush1.msra.mxu0 %v208
    %248 = vmatprep.subr.mxu0 0.0
    %249 = vmatpush1.msra.mxu0 0.0
    %250 = vmatprep.subr.mxu0 0.0
    %251 = vmatpush1.msra.mxu0 0.0
    %252 = vmatprep.subr.mxu0 0.0
    %253 = vmatpush1.msra.mxu0 0.0
    %254 = vmatprep.subr.mxu0 0.0
    %255 = vmatpush1.msra.mxu0 0.0
    %256 = vmatprep.subr.mxu0 0.0
    %257 = vmatpush1.msra.mxu0 0.0
    %258 = vmatprep.subr.mxu0 0.0
    %259 = vmatpush1.msra.mxu0 0.0
    %260 = vmatprep.subr.mxu0 0.0
    %261 = vmatpush1.msra.mxu0 0.0
    %262 = vmatprep.subr.mxu0 0.0
    %263 = vmatpush1.msra.mxu0 0.0
    %264 = vmatprep.subr.mxu0 0.0
    %265 = vmatpush1.msra.mxu0 0.0
    %266 = vmatprep.subr.mxu0 0.0
    %267 = vmatpush1.msra.mxu0 0.0
    %268 = vmatprep.subr.mxu0 0.0
    %269 = vmatpush1.msra.mxu0 0.0
    %270 = vmatprep.subr.mxu0 0.0
    %271 = vmatpush1.msra.mxu0 0.0
    %272 = vmatprep.subr.mxu0 0.0
    %273 = vmatpush1.msra.mxu0 0.0
    %274 = vmatprep.subr.mxu0 0.0
    %275 = vmatpush1.msra.mxu0 0.0
    %276 = vmatprep.subr.mxu0 0.0
    %277 = vmatpush1.msra.mxu0 0.0
    %278 = vmatprep.subr.mxu0 0.0
    %279 = vmatpush1.msra.mxu0 0.0
    %280 = vmatprep.mubr.f32.mxu0 0.0
    %281 = vmatmul.mubr.f32.gmra.mrb[0].mxu0 %v140
    %v282 = vpop.f32.mrb[0].mxu0
    %v283 = vadd.f32 %v214, %v282
    %v284 = vpop.f32.mrb[0].mxu0
    %285 = vdwg.mxu0
    %v286 = vmax.f32 %v283, 0.0
    %v287 = vld [vmem:[#allocation8] sm:$0xff]
    %v288 = vld [vmem:[#allocation8 + $0x8] sm:$0xff]
    %v289 = vld [vmem:[#allocation8 + $0x10] sm:$0xff]
    %v290 = vld [vmem:[#allocation8 + $0x18] sm:$0xff]
    %v291 = vld [vmem:[#allocation8 + $0x20] sm:$0xff]
    %v292 = vld [vmem:[#allocation8 + $0x28] sm:$0xff]
    %v293 = vld [vmem:[#allocation8 + $0x30] sm:$0xff]
    %v294 = vld [vmem:[#allocation8 + $0x38] sm:$0xff]
    %v295 = vld [vmem:[#allocation8 + $0x40] sm:$0xff]
    %v296 = vld [vmem:[#allocation8 + $0x48] sm:$0xff]
    %v297 = vld [vmem:[#allocation8 + $0x50] sm:$0xff]
    %v298 = vld [vmem:[#allocation8 + $0x58] sm:$0xff]
    %v299 = vld [vmem:[#allocation8 + $0x60] sm:$0xff]
    %v300 = vld [vmem:[#allocation8 + $0x68] sm:$0xff]
    %v301 = vld [vmem:[#allocation8 + $0x70] sm:$0xff]
    %v302 = vld [vmem:[#allocation8 + $0x78] sm:$0xff]
    %v303 = vld [vmem:[#allocation9] sm:$0xff]
    %v304 = vld [vmem:[#allocation9 + $0x8] sm:$0xff]
    %v305 = vld [vmem:[#allocation9 + $0x10] sm:$0xff]
    %v306 = vld [vmem:[#allocation9 + $0x18] sm:$0xff]
    %v307 = vunpack.c.0.s8 %v303
    %v308 = vunpack.c.1.s8 %v303
    %v309 = vunpack.c.2.s8 %v303
    %v310 = vunpack.c.3.s8 %v303
    %v311 = vunpack.c.0.s8 %v304
    %v312 = vunpack.c.1.s8 %v304
    %v313 = vunpack.c.2.s8 %v304
    %v314 = vunpack.c.3.s8 %v304
    %v315 = vunpack.c.0.s8 %v305
    %v316 = vunpack.c.1.s8 %v305
    %v317 = vunpack.c.2.s8 %v305
    %v318 = vunpack.c.3.s8 %v305
    %v319 = vunpack.c.0.s8 %v306
    %v320 = vunpack.c.1.s8 %v306
    %v321 = vunpack.c.2.s8 %v306
    %v322 = vunpack.c.3.s8 %v306
    %v323 = vcvt.s32.f32 %v307
    %v324 = vcvt.s32.f32 %v308
    %v325 = vcvt.s32.f32 %v309
    %v326 = vcvt.s32.f32 %v310
    %v327 = vcvt.s32.f32 %v311
    %v328 = vcvt.s32.f32 %v312
    %v329 = vcvt.s32.f32 %v313
    %v330 = vcvt.s32.f32 %v314
    %v331 = vcvt.s32.f32 %v315
    %v332 = vcvt.s32.f32 %v316
    %v333 = vcvt.s32.f32 %v317
    %v334 = vcvt.s32.f32 %v318
    %v335 = vcvt.s32.f32 %v319
    %v336 = vcvt.s32.f32 %v320
    %v337 = vcvt.s32.f32 %v321
    %v338 = vcvt.s32.f32 %v322
    %v339 = vmul.f32 %v287, %v323
    %v340 = vmul.f32 %v288, %v324
    %v341 = vmul.f32 %v289, %v325
    %v342 = vmul.f32 %v290, %v326
    %v343 = vmul.f32 %v291, %v327
    %v344 = vmul.f32 %v292, %v328
    %v345 = vmul.f32 %v293, %v329
    %v346 = vmul.f32 %v294, %v330
    %v347 = vmul.f32 %v295, %v331
    %v348 = vmul.f32 %v296, %v332
    %v349 = vmul.f32 %v297, %v333
    %v350 = vmul.f32 %v298, %v334
    %v351 = vmul.f32 %v299, %v335
    %v352 = vmul.f32 %v300, %v336
    %v353 = vmul.f32 %v301, %v337
    %v354 = vmul.f32 %v302, %v338
    %v355 = vld [vmem:[%s6] sm:$0x1]
    %v357 = vlaneseq
    %v358 = vshrl.u32 %v357, 7
    %v359 = vsub.s32 0, %v358
    %v360 = vrot.slane %v355, %v359
    %362 = vmatprep.subr.mxu0 0.0
    %363 = vmatpush1.msra.mxu0 %v339
    %364 = vmatprep.subr.mxu0 0.0
    %365 = vmatpush1.msra.mxu0 %v340
    %366 = vmatprep.subr.mxu0 0.0
    %367 = vmatpush1.msra.mxu0 %v341
    %368 = vmatprep.subr.mxu0 0.0
    %369 = vmatpush1.msra.mxu0 %v342
    %370 = vmatprep.subr.mxu0 0.0
    %371 = vmatpush1.msra.mxu0 %v343
    %372 = vmatprep.subr.mxu0 0.0
    %373 = vmatpush1.msra.mxu0 %v344
    %374 = vmatprep.subr.mxu0 0.0
    %375 = vmatpush1.msra.mxu0 %v345
    %376 = vmatprep.subr.mxu0 0.0
    %377 = vmatpush1.msra.mxu0 %v346
    %378 = vmatprep.subr.mxu0 0.0
    %379 = vmatpush1.msra.mxu0 %v347
    %380 = vmatprep.subr.mxu0 0.0
    %381 = vmatpush1.msra.mxu0 %v348
    %382 = vmatprep.subr.mxu0 0.0
    %383 = vmatpush1.msra.mxu0 %v349
    %384 = vmatprep.subr.mxu0 0.0
    %385 = vmatpush1.msra.mxu0 %v350
    %386 = vmatprep.subr.mxu0 0.0
    %387 = vmatpush1.msra.mxu0 %v351
    %388 = vmatprep.subr.mxu0 0.0
    %389 = vmatpush1.msra.mxu0 %v352
    %390 = vmatprep.subr.mxu0 0.0
    %391 = vmatpush1.msra.mxu0 %v353
    %392 = vmatprep.subr.mxu0 0.0
    %393 = vmatpush1.msra.mxu0 %v354
    %394 = vmatprep.subr.mxu0 0.0
    %395 = vmatpush1.msra.mxu0 0.0
    %396 = vmatprep.subr.mxu0 0.0
    %397 = vmatpush1.msra.mxu0 0.0
    %398 = vmatprep.subr.mxu0 0.0
    %399 = vmatpush1.msra.mxu0 0.0
    %400 = vmatprep.subr.mxu0 0.0
    %401 = vmatpush1.msra.mxu0 0.0
    %402 = vmatprep.subr.mxu0 0.0
    %403 = vmatpush1.msra.mxu0 0.0
    %404 = vmatprep.subr.mxu0 0.0
    %405 = vmatpush1.msra.mxu0 0.0
    %406 = vmatprep.subr.mxu0 0.0
    %407 = vmatpush1.msra.mxu0 0.0
    %408 = vmatprep.subr.mxu0 0.0
    %409 = vmatpush1.msra.mxu0 0.0
    %410 = vmatprep.subr.mxu0 0.0
    %411 = vmatpush1.msra.mxu0 0.0
    %412 = vmatprep.subr.mxu0 0.0
    %413 = vmatpush1.msra.mxu0 0.0
    %414 = vmatprep.subr.mxu0 0.0
    %415 = vmatpush1.msra.mxu0 0.0
    %416 = vmatprep.subr.mxu0 0.0
    %417 = vmatpush1.msra.mxu0 0.0
    %418 = vmatprep.subr.mxu0 0.0
    %419 = vmatpush1.msra.mxu0 0.0
    %420 = vmatprep.subr.mxu0 0.0
    %421 = vmatpush1.msra.mxu0 0.0
    %422 = vmatprep.subr.mxu0 0.0
    %423 = vmatpush1.msra.mxu0 0.0
    %424 = vmatprep.subr.mxu0 0.0
    %425 = vmatpush1.msra.mxu0 0.0
    %426 = vmatprep.mubr.f32.mxu0 0.0
    %427 = vmatmul.mubr.f32.gmra.mrb[0].mxu0 %v286
    %v428 = vpop.f32.mrb[0].mxu0
    %v429 = vadd.f32 %v360, %v428
    %v430 = vpop.f32.mrb[0].mxu0
    %431 = vdwg.mxu0
    %v432 = vmax.f32 %v429, 0.0
    %v433 = vld [vmem:[#allocation11] sm:$0xff]
    %v434 = vld [vmem:[#allocation11 + $0x8] sm:$0xff]
    %v435 = vld [vmem:[#allocation11 + $0x10] sm:$0xff]
    %v436 = vld [vmem:[#allocation11 + $0x18] sm:$0xff]
    %v437 = vld [vmem:[#allocation11 + $0x20] sm:$0xff]
    %v438 = vld [vmem:[#allocation11 + $0x28] sm:$0xff]
    %v439 = vld [vmem:[#allocation11 + $0x30] sm:$0xff]
    %v440 = vld [vmem:[#allocation11 + $0x38] sm:$0xff]
    %v441 = vld [vmem:[#allocation11 + $0x40] sm:$0xff]
    %v442 = vld [vmem:[#allocation11 + $0x48] sm:$0xff]
    %v443 = vld [vmem:[#allocation11 + $0x50] sm:$0xff]
    %v444 = vld [vmem:[#allocation11 + $0x58] sm:$0xff]
    %v445 = vld [vmem:[#allocation11 + $0x60] sm:$0xff]
    %v446 = vld [vmem:[#allocation11 + $0x68] sm:$0xff]
    %v447 = vld [vmem:[#allocation11 + $0x70] sm:$0xff]
    %v448 = vld [vmem:[#allocation11 + $0x78] sm:$0xff]
    %v449 = vld [vmem:[#allocation12] sm:$0xff]
    %v450 = vld [vmem:[#allocation12 + $0x8] sm:$0xff]
    %v451 = vld [vmem:[#allocation12 + $0x10] sm:$0xff]
    %v452 = vld [vmem:[#allocation12 + $0x18] sm:$0xff]
    %v453 = vunpack.c.0.s8 %v449
    %v454 = vunpack.c.1.s8 %v449
    %v455 = vunpack.c.2.s8 %v449
    %v456 = vunpack.c.3.s8 %v449
    %v457 = vunpack.c.0.s8 %v450
    %v458 = vunpack.c.1.s8 %v450
    %v459 = vunpack.c.2.s8 %v450
    %v460 = vunpack.c.3.s8 %v450
    %v461 = vunpack.c.0.s8 %v451
    %v462 = vunpack.c.1.s8 %v451
    %v463 = vunpack.c.2.s8 %v451
    %v464 = vunpack.c.3.s8 %v451
    %v465 = vunpack.c.0.s8 %v452
    %v466 = vunpack.c.1.s8 %v452
    %v467 = vunpack.c.2.s8 %v452
    %v468 = vunpack.c.3.s8 %v452
    %v469 = vcvt.s32.f32 %v453
    %v470 = vcvt.s32.f32 %v454
    %v471 = vcvt.s32.f32 %v455
    %v472 = vcvt.s32.f32 %v456
    %v473 = vcvt.s32.f32 %v457
    %v474 = vcvt.s32.f32 %v458
    %v475 = vcvt.s32.f32 %v459
    %v476 = vcvt.s32.f32 %v460
    %v477 = vcvt.s32.f32 %v461
    %v478 = vcvt.s32.f32 %v462
    %v479 = vcvt.s32.f32 %v463
    %v480 = vcvt.s32.f32 %v464
    %v481 = vcvt.s32.f32 %v465
    %v482 = vcvt.s32.f32 %v466
    %v483 = vcvt.s32.f32 %v467
    %v484 = vcvt.s32.f32 %v468
    %v485 = vmul.f32 %v433, %v469
    %v486 = vmul.f32 %v434, %v470
    %v487 = vmul.f32 %v435, %v471
    %v488 = vmul.f32 %v436, %v472
    %v489 = vmul.f32 %v437, %v473
    %v490 = vmul.f32 %v438, %v474
    %v491 = vmul.f32 %v439, %v475
    %v492 = vmul.f32 %v440, %v476
    %v493 = vmul.f32 %v441, %v477
    %v494 = vmul.f32 %v442, %v478
    %v495 = vmul.f32 %v443, %v479
    %v496 = vmul.f32 %v444, %v480
    %v497 = vmul.f32 %v445, %v481
    %v498 = vmul.f32 %v446, %v482
    %v499 = vmul.f32 %v447, %v483
    %v500 = vmul.f32 %v448, %v484
    %v501 = vld [vmem:[%s9] sm:$0x1]
    %v503 = vlaneseq
    %v504 = vshrl.u32 %v503, 7
    %v505 = vsub.s32 0, %v504
    %v506 = vrot.slane %v501, %v505
    %508 = vmatprep.subr.mxu0 0.0
    %509 = vmatpush1.msra.mxu0 %v485
    %510 = vmatprep.subr.mxu0 0.0
    %511 = vmatpush1.msra.mxu0 %v486
    %512 = vmatprep.subr.mxu0 0.0
    %513 = vmatpush1.msra.mxu0 %v487
    %514 = vmatprep.subr.mxu0 0.0
    %515 = vmatpush1.msra.mxu0 %v488
    %516 = vmatprep.subr.mxu0 0.0
    %517 = vmatpush1.msra.mxu0 %v489
    %518 = vmatprep.subr.mxu0 0.0
    %519 = vmatpush1.msra.mxu0 %v490
    %520 = vmatprep.subr.mxu0 0.0
    %521 = vmatpush1.msra.mxu0 %v491
    %522 = vmatprep.subr.mxu0 0.0
    %523 = vmatpush1.msra.mxu0 %v492
    %524 = vmatprep.subr.mxu0 0.0
    %525 = vmatpush1.msra.mxu0 %v493
    %526 = vmatprep.subr.mxu0 0.0
    %527 = vmatpush1.msra.mxu0 %v494
    %528 = vmatprep.subr.mxu0 0.0
    %529 = vmatpush1.msra.mxu0 %v495
    %530 = vmatprep.subr.mxu0 0.0
    %531 = vmatpush1.msra.mxu0 %v496
    %532 = vmatprep.subr.mxu0 0.0
    %533 = vmatpush1.msra.mxu0 %v497
    %534 = vmatprep.subr.mxu0 0.0
    %535 = vmatpush1.msra.mxu0 %v498
    %536 = vmatprep.subr.mxu0 0.0
    %537 = vmatpush1.msra.mxu0 %v499
    %538 = vmatprep.subr.mxu0 0.0
    %539 = vmatpush1.msra.mxu0 %v500
    %540 = vmatprep.subr.mxu0 0.0
    %541 = vmatpush1.msra.mxu0 0.0
    %542 = vmatprep.subr.mxu0 0.0
    %543 = vmatpush1.msra.mxu0 0.0
    %544 = vmatprep.subr.mxu0 0.0
    %545 = vmatpush1.msra.mxu0 0.0
    %546 = vmatprep.subr.mxu0 0.0
    %547 = vmatpush1.msra.mxu0 0.0
    %548 = vmatprep.subr.mxu0 0.0
    %549 = vmatpush1.msra.mxu0 0.0
    %550 = vmatprep.subr.mxu0 0.0
    %551 = vmatpush1.msra.mxu0 0.0
    %552 = vmatprep.subr.mxu0 0.0
    %553 = vmatpush1.msra.mxu0 0.0
    %554 = vmatprep.subr.mxu0 0.0
    %555 = vmatpush1.msra.mxu0 0.0
    %556 = vmatprep.subr.mxu0 0.0
    %557 = vmatpush1.msra.mxu0 0.0
    %558 = vmatprep.subr.mxu0 0.0
    %559 = vmatpush1.msra.mxu0 0.0
    %560 = vmatprep.subr.mxu0 0.0
    %561 = vmatpush1.msra.mxu0 0.0
    %562 = vmatprep.subr.mxu0 0.0
    %563 = vmatpush1.msra.mxu0 0.0
    %564 = vmatprep.subr.mxu0 0.0
    %565 = vmatpush1.msra.mxu0 0.0
    %566 = vmatprep.subr.mxu0 0.0
    %567 = vmatpush1.msra.mxu0 0.0
    %568 = vmatprep.subr.mxu0 0.0
    %569 = vmatpush1.msra.mxu0 0.0
    %570 = vmatprep.subr.mxu0 0.0
    %571 = vmatpush1.msra.mxu0 0.0
    %572 = vmatprep.mubr.f32.mxu0 0.0
    %573 = vmatmul.mubr.f32.gmra.mrb[0].mxu0 %v432
    %v574 = vpop.f32.mrb[0].mxu0
    %v575 = vadd.f32 %v506, %v574
    %v576 = vpop.f32.mrb[0].mxu0
    %577 = vdwg.mxu0
    %v578 = vtanh.pop %v575
    %v579 = vld [vmem:[%s11] sm:$0x1]
    %v581 = vlaneseq
    %v582 = vshrl.u32 %v581, 7
    %v583 = vsub.s32 0, %v582
    %v584 = vrot.slane %v579, %v583
    %v586 = vmul.f32 %v584, %v578
    %v587 = vld [vmem:[%s12] sm:$0x1]
    %v589 = vlaneseq
    %v590 = vshrl.u32 %v589, 7
    %v591 = vsub.s32 0, %v590
    %v592 = vrot.slane %v587, %v591
    %v594 = vadd.f32 %v586, %v592
    %595 = vst [vmem:[%s13] sm:$0xff] %v594
    // Predicated region
    $region74: #{_kalei_forward.1} parent=1 // pred_check
      _
    $region75: #{_kalei_forward.1} parent=1 // pred_check_branch
      %597 = sbr.rel (0) target = $region77
    $region76: #{_kalei_forward.1} parent=1 // pred_region
      _
    $region77: #{_kalei_forward.1} parent=1 // pred_fallthru
      _
    // Predicated region
    $region78: #{_kalei_forward.1} parent=1 // pred_check
      _
    $region79: #{_kalei_forward.1} parent=1 // pred_check_branch
      %599 = sbr.rel (0) target = $region81
    $region80: #{_kalei_forward.1} parent=1 // pred_region
      _
    $region81: #{_kalei_forward.1} parent=1 // pred_fallthru
      _
    %600 = vsyncpa [#allocation5], 1
    %601 = vsyncpa [#allocation7], 1
    %602 = vsyncpa [#allocation10], 1
    %603 = vsyncpa [#allocation13], 1

</llo_original>
